<compile_context>
chip_gen: v7x
topology: tpu7x:2x2x1
jax: 0.10.0
libtpu: 0.0.40
codegen_flags: <defaults>
</compile_context>

<pallas_src>
import jax
import jax.numpy as jnp
from jax.experimental import pallas as pl
from jax.experimental.pallas import tpu as pltpu


# ---------------------------------------------------------------------------
# Tile-size selection
# ---------------------------------------------------------------------------
_TILE_BYTES_BUDGET = 4 * 1024 * 1024     # per input tile; ~4x for in/out double-buffer
_VMEM_LIMIT_BYTES = 32 * 1024 * 1024     # safe on v5e/v6e (128 MiB) and v7x (64 MiB)


def _pick_batch_tile(B, F, itemsize):
    """Largest batch tile whose (TB, F) slab fits the per-tile byte budget.

    With input and output both double-buffered the VMEM footprint is roughly
    4 * TB * F * itemsize, so a 4 MiB tile budget stays well inside the
    32 MiB scoped-VMEM limit on every generation (including v7x's 64 MiB).
    Partial-batch tiles must be 8-sublane aligned unless they cover the whole
    batch dimension.
    """
    tb = max(1, _TILE_BYTES_BUDGET // max(1, F * itemsize))
    if tb >= B:
        return B                          # full batch dim -> always a legal block
    tb = (tb // 8) * 8                    # 8-sublane alignment for partial blocks
    if tb < 8:
        tb = 8 if B >= 8 else B
    return min(tb, B)


# ---------------------------------------------------------------------------
# Kernels
# ---------------------------------------------------------------------------
def _maxmin_fwd_keepzero_kernel(x_ref, y_ref, maxv_ref):
    # keep_zero_position=True:  y = x / max(|x|)   (per row), min_vals == 0
    x = x_ref[...]                                              # (TB, F) native dtype
    row_max = jnp.max(x, axis=1, keepdims=True)                 # exact in native dtype
    row_min = jnp.min(x, axis=1, keepdims=True)
    max_abs = jnp.maximum(row_max, jnp.abs(row_min)).astype(jnp.float32)  # (TB, 1)
    inv = 1.0 / max_abs                                         # one divide per row
    maxv_ref[...] = max_abs.astype(maxv_ref.dtype)
    y_ref[...] = (x.astype(jnp.float32) * inv).astype(y_ref.dtype)


def _maxmin_fwd_range_kernel(x_ref, y_ref, maxv_ref, minv_ref):
    # keep_zero_position=False:  y = (x - min) / (max - min)   (per row)
    x = x_ref[...]                                              # (TB, F) native dtype
    row_max = jnp.max(x, axis=1, keepdims=True).astype(jnp.float32)
    row_min = jnp.min(x, axis=1, keepdims=True).astype(jnp.float32)
    inv = 1.0 / (row_max - row_min)                             # one divide per row
    maxv_ref[...] = row_max.astype(maxv_ref.dtype)
    minv_ref[...] = row_min.astype(minv_ref.dtype)
    y_ref[...] = ((x.astype(jnp.float32) - row_min) * inv).astype(y_ref.dtype)


def _maxmin_inv_kernel(x_ref, maxv_ref, minv_ref, y_ref):
    # inverse: y = x * (max - min) + min   (per-row broadcast)
    scale = maxv_ref[...].astype(jnp.float32) - minv_ref[...].astype(jnp.float32)
    shift = minv_ref[...].astype(jnp.float32)
    y_ref[...] = (x_ref[...].astype(jnp.float32) * scale + shift).astype(y_ref.dtype)


# ---------------------------------------------------------------------------
# Wrappers (flatten / reshape glue stays in plain JAX)
# ---------------------------------------------------------------------------
def _maxmin_forward_2d(x2d, keep_zero_position):
    B, F = x2d.shape
    itemsize = x2d.dtype.itemsize
    tb = _pick_batch_tile(B, F, itemsize)
    grid = (pl.cdiv(B, tb),)
    row_spec = pl.BlockSpec((tb, F), lambda i: (i, 0))
    stat_spec = pl.BlockSpec((tb, 1), lambda i: (i, 0))
    compiler_params = pltpu.CompilerParams(
        dimension_semantics=("parallel",),
        vmem_limit_bytes=_VMEM_LIMIT_BYTES,
    )
    cost = pl.CostEstimate(flops=5 * B * F, transcendentals=0,
                           bytes_accessed=2 * B * F * itemsize)

    if keep_zero_position:
        y, max_vals = pl.pallas_call(
            _maxmin_fwd_keepzero_kernel,
            out_shape=(
                jax.ShapeDtypeStruct((B, F), x2d.dtype),
                jax.ShapeDtypeStruct((B, 1), x2d.dtype),
            ),
            grid=grid,
            in_specs=[row_spec],
            out_specs=(row_spec, stat_spec),
            compiler_params=compiler_params,
            cost_estimate=cost,
        )(x2d)
        min_vals = jnp.zeros((B, 1), dtype=x2d.dtype)   # identically zero; built in wrapper
        return y, max_vals, min_vals

    y, max_vals, min_vals = pl.pallas_call(
        _maxmin_fwd_range_kernel,
        out_shape=(
            jax.ShapeDtypeStruct((B, F), x2d.dtype),
            jax.ShapeDtypeStruct((B, 1), x2d.dtype),
            jax.ShapeDtypeStruct((B, 1), x2d.dtype),
        ),
        grid=grid,
        in_specs=[row_spec],
        out_specs=(row_spec, stat_spec, stat_spec),
        compiler_params=compiler_params,
        cost_estimate=cost,
    )(x2d)
    return y, max_vals, min_vals


def _maxmin_inverse_2d(x2d, max_vals, min_vals):
    B, F = x2d.shape
    itemsize = x2d.dtype.itemsize
    tb = _pick_batch_tile(B, F, itemsize)
    grid = (pl.cdiv(B, tb),)
    row_spec = pl.BlockSpec((tb, F), lambda i: (i, 0))
    stat_spec = pl.BlockSpec((tb, 1), lambda i: (i, 0))
    return pl.pallas_call(
        _maxmin_inv_kernel,
        out_shape=jax.ShapeDtypeStruct((B, F), x2d.dtype),
        grid=grid,
        in_specs=[row_spec, stat_spec, stat_spec],
        out_specs=row_spec,
        compiler_params=pltpu.CompilerParams(
            dimension_semantics=("parallel",),
            vmem_limit_bytes=_VMEM_LIMIT_BYTES,
        ),
        cost_estimate=pl.CostEstimate(flops=2 * B * F, transcendentals=0,
                                      bytes_accessed=2 * B * F * itemsize),
    )(x2d, max_vals, min_vals)


def _as_col(v, B, dtype):
    """Coerce stored stats (python scalar or keepdim array) to a (B, 1) array."""
    arr = jnp.asarray(v, dtype=dtype)
    if arr.ndim == 0:
        return jnp.full((B, 1), arr, dtype=dtype)
    return arr.reshape(B, 1)


class MaxMinNorm:
    """JAX/Pallas port of the PyTorch MaxMinNorm module.

    No trainable weights.  Like the torch version, it caches max_vals /
    min_vals from the last forward call so that the inverse transform can be
    applied afterwards.  Note: this caching is Python-side mutable state; do
    not jit/vmap __call__ directly if you rely on the cached stats.
    Constant rows (max == min) produce inf/nan exactly as the torch formula
    does -- no epsilon is added.
    """

    def __init__(self, keep_zero_position: bool = True):
        self.keep_zero_position = keep_zero_position
        self.min_vals = 0.0
        self.max_vals = 0.0

    def __call__(self, x, inverse: bool = False):
        B = x.shape[0]
        F = 1
        for d in x.shape[1:]:
            F *= d
        x2d = x.reshape(B, F)

        if inverse:
            max2d = _as_col(self.max_vals, B, x2d.dtype)
            min2d = _as_col(self.min_vals, B, x2d.dtype)
            return _maxmin_inverse_2d(x2d, max2d, min2d).reshape(x.shape)

        y2d, max_vals, min_vals = _maxmin_forward_2d(x2d, self.keep_zero_position)
        keep_shape = (B,) + (1,) * (x.ndim - 1)        # torch's keepdim=True shape
        self.max_vals = max_vals.reshape(keep_shape)
        if self.keep_zero_position:
            self.min_vals = 0.0                        # matches torch: zero shift
        else:
            self.min_vals = min_vals.reshape(keep_shape)
        return y2d.reshape(x.shape)


# ---------------------------------------------------------------------------
# Reference (plain JAX) for verification
# ---------------------------------------------------------------------------
def _reference_forward(x, keep_zero_position):
    axes = tuple(range(1, x.ndim))
    row_max = jnp.max(x, axis=axes, keepdims=True)
    row_min = jnp.min(x, axis=axes, keepdims=True)
    if keep_zero_position:
        max_vals = jnp.maximum(row_max, jnp.abs(row_min))
        min_vals = jnp.zeros_like(max_vals)
    else:
        max_vals = row_max
        min_vals = row_min
    return (x - min_vals) / (max_vals - min_vals)


if __name__ == "__main__":
    key = jax.random.PRNGKey(0)
    # small NCHW-like input, consistent with "(batch_size, *)"
    x = jax.random.normal(key, (2, 4, 16, 16), dtype=jnp.float32)

    # keep_zero_position=True  -> output in [-1, 1]
    norm_keep = MaxMinNorm(keep_zero_position=True)
    y_keep = norm_keep(x)
    jax.block_until_ready(y_keep)
    ref_keep = _reference_forward(x, True)
    assert jnp.allclose(y_keep, ref_keep, atol=1e-6, rtol=1e-6)

    # keep_zero_position=False -> output in [0, 1]
    norm_range = MaxMinNorm(keep_zero_position=False)
    y_range = norm_range(x)
    jax.block_until_ready(y_range)
    ref_range = _reference_forward(x, False)
    assert jnp.allclose(y_range, ref_range, atol=1e-6, rtol=1e-6)

    # inverse round-trip: x ~= inverse(forward(x))
    x_back = norm_range(y_range, inverse=True)
    jax.block_until_ready(x_back)
    assert jnp.allclose(x_back, x, atol=1e-5, rtol=1e-5)

    print("KERNEL_OK")
</pallas_src>

<mosaic_0001>
module attributes {stable_mosaic.version = 11 : i64} {
  func.func @_maxmin_fwd_keepzero_kernel(%arg0: i32, %arg1: memref<2x1024xf32, #tpu.memory_space<vmem>>, %arg2: memref<2x1024xf32, #tpu.memory_space<vmem>>, %arg3: memref<2x1xf32, #tpu.memory_space<vmem>>) attributes {dimension_semantics = [#tpu.dimension_semantics<parallel>], iteration_bounds = array<i64: 1>, scalar_prefetch = 0 : i64, scratch_operands = 0 : i64, tpu.core_type = #tpu.core_type<tc>, window_params = [{transform_indices = @transform_0, window_bounds = array<i64: 2, 1024>}, {transform_indices = @transform_1, window_bounds = array<i64: 2, 1024>}, {transform_indices = @transform_2, window_bounds = array<i64: 2, 1>}]} {
    %c0 = arith.constant 0 : index
    %c0_0 = arith.constant 0 : index
    %0 = vector.load %arg1[%c0, %c0_0] : memref<2x1024xf32, #tpu.memory_space<vmem>>, vector<2x1024xf32>
    %cst = arith.constant dense<0xFF800000> : vector<2xf32>
    %1 = vector.multi_reduction <maximumf>, %0, %cst [1] : vector<2x1024xf32> to vector<2xf32>
    %2 = vector.shape_cast %1 : vector<2xf32> to vector<2x1xf32>
    %cst_1 = arith.constant dense<0x7F800000> : vector<2xf32>
    %3 = vector.multi_reduction <minimumf>, %0, %cst_1 [1] : vector<2x1024xf32> to vector<2xf32>
    %4 = vector.shape_cast %3 : vector<2xf32> to vector<2x1xf32>
    %5 = math.absf %4 : vector<2x1xf32>
    %6 = arith.maximumf %2, %5 : vector<2x1xf32>
    %cst_2 = arith.constant 1.000000e+00 : f32
    %7 = vector.broadcast %cst_2 : f32 to vector<2x1xf32>
    %8 = arith.divf %7, %6 : vector<2x1xf32>
    %c0_3 = arith.constant 0 : index
    %c0_4 = arith.constant 0 : index
    %9 = vector.load %arg3[%c0_3, %c0_4] : memref<2x1xf32, #tpu.memory_space<vmem>>, vector<2x1xf32>
    tpu.vector_store %arg3[%c0_3, %c0_4], %6 {strides = array<i32>} : memref<2x1xf32, #tpu.memory_space<vmem>>, vector<2x1xf32>,
    %10 = vector.broadcast %8 : vector<2x1xf32> to vector<2x1024xf32>
    %11 = arith.mulf %0, %10 : vector<2x1024xf32>
    %c0_5 = arith.constant 0 : index
    %c0_6 = arith.constant 0 : index
    %12 = vector.load %arg2[%c0_5, %c0_6] : memref<2x1024xf32, #tpu.memory_space<vmem>>, vector<2x1024xf32>
    tpu.vector_store %arg2[%c0_5, %c0_6], %11 {strides = array<i32>} : memref<2x1024xf32, #tpu.memory_space<vmem>>, vector<2x1024xf32>,
    return
  }
  func.func @transform_0(%arg0: i32) -> (i32, i32) {
    %c0_i32 = arith.constant 0 : i32
    %c0_i32_0 = arith.constant 0 : i32
    return %arg0, %c0_i32 : i32, i32
  }
  func.func @transform_1(%arg0: i32) -> (i32, i32) {
    %c0_i32 = arith.constant 0 : i32
    %c0_i32_0 = arith.constant 0 : i32
    return %arg0, %c0_i32 : i32, i32
  }
  func.func @transform_2(%arg0: i32) -> (i32, i32) {
    %c0_i32 = arith.constant 0 : i32
    %c0_i32_0 = arith.constant 0 : i32
    return %arg0, %c0_i32 : i32, i32
  }
}

</mosaic_0001>

<llo_original>
// kernel: tpu_custom_call.1
$region0: #{tpu_custom_call.1}
  #allocation0 [shape = 'u32[]', space=smem, size = 0x4, offset = 0x4, fixed_abs, tag = 'smem constant byte address 0x4 - core index']
  #allocation1 [shape = 'u32[144,128]{1,0:T(1,128)}', space=vmem, size = 0x12000, scoped, tag = 'internal scratch']
  %s0 = inlined_call_operand.hbm [shape: f32[2,1024], index: 0, kind: input, shape index: {}]
  %s1 = inlined_call_operand.hbm [shape: f32[2,1024], index: 1, kind: output, shape index: {0}]
  %s2 = inlined_call_operand.vmem [shape: f32[2,1], index: 2, kind: output, shape index: {1}]
  %3 = xla_tuple %s1, %s2
  %s4 = sld [smem:[#allocation0]]
  $region26: #{tpu_custom_call.1} parent=0
    _
  %s6 = ssub.s32 1, %s4
  %s7 = scalar_select 0, %s6, %s4
  $region1: #{tpu_custom_call.1} parent=0
    #allocation2 [shape = 'u8[8192]{0}', space=vmem, size = 0x2000, scoped, tag = 'input window, operand 0, single buffered']
    #allocation3 [shape = 's32[1]{0}', space=sflag, size = 0x4, scoped, tag = 'scoped memory for tpu_custom_call.1']
    #allocation4 [shape = 's32[1]{0}', space=sflag, size = 0x4, scoped, tag = 'scoped memory for tpu_custom_call.1']
    #allocation5 [shape = 'u8[8192]{0}', space=vmem, size = 0x2000, scoped, tag = 'output window, operand 0, single buffered']
    %8 = vsyncpa [#allocation3], 0
    %9 = vsyncpa [#allocation4], 0
    // Predicated region
    $region2: #{tpu_custom_call.1} parent=1 // pred_check
      _
    $region3: #{tpu_custom_call.1} parent=1 // pred_check_branch
      %11 = sbr.rel (0) target = $region5
    $region4: #{tpu_custom_call.1} parent=1 // pred_region
      %s13 = ssub.s32 256, 256
      %14 = vsyncadd [#allocation3], %s13
      %s16 = sshll.u32 [#allocation2], 4
      %s17 = int_to_ptr.vmem [resolvable:$true] %s16
      %19 = dma.hbm_to_vmem [thread:$0]  %s0, 256, %s17, [#allocation3]
    $region5: #{tpu_custom_call.1} parent=1 // pred_fallthru
      _
    // Predicated region
    $region6: #{tpu_custom_call.1} parent=1 // pred_check
      _
    $region7: #{tpu_custom_call.1} parent=1 // pred_check_branch
      %21 = sbr.rel (0) target = $region9
    $region8: #{tpu_custom_call.1} parent=1 // pred_region
      %22 = dma.done [#allocation3], 256
    $region9: #{tpu_custom_call.1} parent=1 // pred_fallthru
      _
    %v23 = vld [vmem:[#allocation2] sm:$0xff]
    %v24 = vld [vmem:[#allocation2 + $0x8] sm:$0xff]
    %v27 = vcombine.high %v23, %v23
    %v29 = vunpack.c.l.s4 1983009808
    %v30 = vunpack.c.0.s8 %v29
    %v31 = vlaneseq
    %v32 = vshrl.u32 %v31, 7
    %v33 = vsub.s32 %v30, %v32
    %v34 = vrot.slane %v23, %v33
    %v36 = vunpack.c.l.s4 1983009808
    %v37 = vunpack.c.0.s8 %v36
    %v38 = vlaneseq
    %v39 = vshrl.u32 %v38, 7
    %v40 = vsub.s32 %v37, %v39
    %v41 = vrot.slane %v27, %v40
    %v42 = vcombine.high %v34, %v34
    %v43 = vcombine.high %v41, %v41
    %v44 = vcombine.high %v24, %v24
    %v46 = vunpack.c.l.s4 1983009808
    %v47 = vunpack.c.0.s8 %v46
    %v48 = vlaneseq
    %v49 = vshrl.u32 %v48, 7
    %v50 = vsub.s32 %v47, %v49
    %v51 = vrot.slane %v24, %v50
    %v53 = vunpack.c.l.s4 1983009808
    %v54 = vunpack.c.0.s8 %v53
    %v55 = vlaneseq
    %v56 = vshrl.u32 %v55, 7
    %v57 = vsub.s32 %v54, %v56
    %v58 = vrot.slane %v44, %v57
    %v59 = vcombine.high %v51, %v51
    %v60 = vcombine.high %v58, %v58
    %vm69 = vcmask 1041408
    %v70 = vsel %vm69, %v34, -inf
    %v71 = vsel %vm69, %v42, -inf
    %v72 = vsel %vm69, %v41, -inf
    %v73 = vsel %vm69, %v43, -inf
    %v74 = vsel %vm69, %v51, -inf
    %v75 = vmax.f32 %v70, %v74
    %v76 = vsel %vm69, %v59, -inf
    %v77 = vmax.f32 %v71, %v76
    %v78 = vsel %vm69, %v58, -inf
    %v79 = vmax.f32 %v72, %v78
    %v80 = vsel %vm69, %v60, -inf
    %v81 = vmax.f32 %v73, %v80
    %v82 = vmax.f32 %v75, %v77
    %v83 = vmax.f32 %v79, %v81
    %v84 = vmax.f32 %v82, %v83
    %85 = vmax.xlane.f32.xlu0 %v84
    %v86 = vpop.xlane.xlu0 %85
    %v87 = vsel %vm69, %v34, inf
    %v88 = vsel %vm69, %v42, inf
    %v89 = vsel %vm69, %v41, inf
    %v90 = vsel %vm69, %v43, inf
    %v91 = vsel %vm69, %v51, inf
    %v92 = vmin.f32 %v87, %v91
    %v93 = vsel %vm69, %v59, inf
    %v94 = vmin.f32 %v88, %v93
    %v95 = vsel %vm69, %v58, inf
    %v96 = vmin.f32 %v89, %v95
    %v97 = vsel %vm69, %v60, inf
    %v98 = vmin.f32 %v90, %v97
    %v99 = vmin.f32 %v92, %v94
    %v100 = vmin.f32 %v96, %v98
    %v101 = vmin.f32 %v99, %v100
    %102 = vmin.xlane.f32.xlu0 %v101
    %v103 = vpop.xlane.xlu0 %102
    %v104 = vand.u32 2147483647, %v103
    %v105 = vmax.f32 %v86, %v104
    %v106 = vrcp.pop %v105
    %v107 = vmul.f32 1.0, %v106
    %vm108 = vcmask 1024
    %109 = vst.msk [vmem:[%s2] sm:$0x3] %vm108, %v105
    %v112 = vunpack.c.l.s4 269488144
    %v113 = vunpack.c.0.s8 %v112
    %v114 = vlaneseq
    %v115 = vshrl.u32 %v114, 7
    %v116 = vsub.s32 %v113, %v115
    %v117 = vrot.slane %v107, %v116
    %v119 = vmul.f32 %v23, %v117
    %v120 = vmul.f32 %v24, %v117
    %121 = vst [vmem:[#allocation5] sm:$0xff] %v119
    %122 = vst [vmem:[#allocation5 + $0x8] sm:$0xff] %v120
    // Predicated region
    $region10: #{tpu_custom_call.1} parent=1 // pred_check
      _
    $region11: #{tpu_custom_call.1} parent=1 // pred_check_branch
      %124 = sbr.rel (0) target = $region13
    $region12: #{tpu_custom_call.1} parent=1 // pred_region
      %s126 = ssub.s32 256, 256
      %127 = vsyncadd [#allocation4], %s126
      %s129 = sshll.u32 [#allocation5], 4
      %s130 = int_to_ptr.vmem [resolvable:$true] %s129
      %132 = dma.vmem_to_hbm [thread:$0]  %s130, 256, %s1, [#allocation4]
    $region13: #{tpu_custom_call.1} parent=1 // pred_fallthru
      _
    // Predicated region
    $region14: #{tpu_custom_call.1} parent=1 // pred_check
      _
    $region15: #{tpu_custom_call.1} parent=1 // pred_check_branch
      %134 = sbr.rel (0) target = $region17
    $region16: #{tpu_custom_call.1} parent=1 // pred_region
      _
    $region17: #{tpu_custom_call.1} parent=1 // pred_fallthru
      _
    // Predicated region
    $region18: #{tpu_custom_call.1} parent=1 // pred_check
      _
    $region19: #{tpu_custom_call.1} parent=1 // pred_check_branch
      %136 = sbr.rel (0) target = $region21
    $region20: #{tpu_custom_call.1} parent=1 // pred_region
      %137 = dma.done [#allocation4], 256
    $region21: #{tpu_custom_call.1} parent=1 // pred_fallthru
      _
    // Predicated region
    $region22: #{tpu_custom_call.1} parent=1 // pred_check
      _
    $region23: #{tpu_custom_call.1} parent=1 // pred_check_branch
      %139 = sbr.rel (0) target = $region25
    $region24: #{tpu_custom_call.1} parent=1 // pred_region
      _
    $region25: #{tpu_custom_call.1} parent=1 // pred_fallthru
      _
    %140 = vsyncpa [#allocation3], 1
    %141 = vsyncpa [#allocation4], 1

</llo_original>
